<compile_context>
chip_gen: v5e
topology: v5e:2x2
jax: 0.10.0
libtpu: 0.0.40
codegen_flags: <defaults>
</compile_context>

<pallas_src>
import jax
import jax.numpy as jnp
from jax.experimental import pallas as pl
from jax.experimental.pallas import tpu as pltpu


def _round_up(n, m):
    return pl.cdiv(n, m) * m


def _generator_kernel(x_ref, w_ref, b_ref, o_ref):
    # x_ref: [TB, K] f32   w_ref: [K, Np] f32   b_ref: [1, Np] f32   o_ref: [TB, Np] f32
    y = jnp.dot(x_ref[...], w_ref[...], preferred_element_type=jnp.float32)
    y = y + b_ref[...]                                  # broadcast bias over rows
    e = jnp.exp(-y)                                     # EUP transcendental
    o_ref[...] = pl.reciprocal(1.0 + e, approx=True)    # sigmoid via EUP vrcp


def generator_forward(x, weight, bias, *, tb=512):
    """Generator.forward.

    x:      [B, 101, d_model] f32
    weight: [TFs, 101*d_model] f32   (PyTorch nn.Linear layout: (out, in))
    bias:   [TFs] f32
    returns [B, TFs] f32 = sigmoid(flatten(x, 1) @ weight.T + bias)
    """
    B = x.shape[0]
    N, K = weight.shape
    assert x.shape[1] * x.shape[2] == K, "weight in_features must equal 101*d_model"

    x_flat = x.reshape(B, K)          # torch.flatten(x, start_dim=1) — contiguous, free

    # Lane-dense / MXU-aligned out-features: pad only W and bias (tiny, one-time).
    N_pad = _round_up(N, 128)
    w_p = jnp.zeros((K, N_pad), jnp.float32).at[:, :N].set(weight.astype(jnp.float32).T)
    b_p = jnp.zeros((1, N_pad), jnp.float32).at[:, :N].set(bias.astype(jnp.float32)[None, :])

    # Batch tile: ~4 MiB per x buffer (double-buffered) keeps total VMEM well
    # under the scoped default on every generation while staying near the HBM
    # roofline; sublane (8) aligned.
    x_budget = 8 * 1024 * 1024                       # two buffers of the x tile
    rows_cap = max(8, (x_budget // (2 * K * 4)) // 8 * 8)
    TB = min(tb, rows_cap, _round_up(B, 8))
    B_pad = _round_up(B, TB)
    if B_pad != B:                                   # only copies when B % TB != 0
        x_flat = jnp.pad(x_flat, ((0, B_pad - B), (0, 0)))

    grid = (B_pad // TB,)
    out = pl.pallas_call(
        _generator_kernel,
        out_shape=jax.ShapeDtypeStruct((B_pad, N_pad), jnp.float32),
        grid_spec=pltpu.PrefetchScalarGridSpec(
            num_scalar_prefetch=0,
            grid=grid,
            in_specs=[
                # x tile strides with the batch-grid index; W/bias stay VMEM-resident
                # (constant block index => fetched once, not re-DMA'd per step).
                pl.BlockSpec((TB, K), lambda i: (i, 0)),
                pl.BlockSpec((K, N_pad), lambda i: (0, 0)),
                pl.BlockSpec((1, N_pad), lambda i: (0, 0)),
            ],
            out_specs=pl.BlockSpec((TB, N_pad), lambda i: (i, 0)),
        ),
        compiler_params=pltpu.CompilerParams(
            dimension_semantics=("parallel",),       # megacore sharding on v7x
            vmem_limit_bytes=32 * 1024 * 1024,       # headroom; safe on v5e/v6e/v7x
        ),
    )(x_flat, w_p, b_p)

    return out[:B, :N]
    # TODO(synk): at production scale, fuse this Linear+Sigmoid epilogue into the
    # upstream transformer kernel so the fixed pallas_call overhead is amortized.


if __name__ == "__main__":
    # Small, module-consistent shapes: seq length 101 is hard-coded by the module.
    batch = 2
    d_model = 32
    seq = 101                        # fixed: Linear(d_model * 101, ...)
    tfs_cell_line_pair = 16
    K = d_model * seq

    key = jax.random.PRNGKey(0)
    kx, kw, kb = jax.random.split(key, 3)

    # PyTorch-Linear-like uniform init, (out, in) weight layout.
    bound = 1.0 / jnp.sqrt(jnp.float32(K))
    weight = jax.random.uniform(kw, (tfs_cell_line_pair, K),
                                minval=-bound, maxval=bound, dtype=jnp.float32)
    bias = jax.random.uniform(kb, (tfs_cell_line_pair,),
                              minval=-bound, maxval=bound, dtype=jnp.float32)
    x = jax.random.normal(kx, (batch, seq, d_model), dtype=jnp.float32)

    out = generator_forward(x, weight, bias)
    out = jax.block_until_ready(out)

    # Pure-JAX reference; tolerance covers MXU accumulation + approx reciprocal.
    ref = jax.nn.sigmoid(x.reshape(batch, K) @ weight.T + bias)

    assert out.shape == (batch, tfs_cell_line_pair)
    assert jnp.allclose(out, ref, atol=5e-3, rtol=5e-3)

    print("KERNEL_OK")
</pallas_src>

<mosaic_0001>
module attributes {stable_mosaic.version = 11 : i64} {
  func.func @_generator_kernel(%arg0: i32, %arg1: memref<8x3232xf32, #tpu.memory_space<vmem>>, %arg2: memref<3232x128xf32, #tpu.memory_space<vmem>>, %arg3: memref<1x128xf32, #tpu.memory_space<vmem>>, %arg4: memref<8x128xf32, #tpu.memory_space<vmem>>) attributes {dimension_semantics = [#tpu.dimension_semantics<parallel>], iteration_bounds = array<i64: 1>, scalar_prefetch = 0 : i64, scratch_operands = 0 : i64, tpu.core_type = #tpu.core_type<tc>, window_params = [{transform_indices = @transform_0, window_bounds = array<i64: 8, 3232>}, {pipeline_mode = #tpu.pipeline_mode<synchronous>, transform_indices = @transform_1, window_bounds = array<i64: 3232, 128>}, {pipeline_mode = #tpu.pipeline_mode<synchronous>, transform_indices = @transform_2, window_bounds = array<i64: 1, 128>}, {transform_indices = @transform_3, window_bounds = array<i64: 8, 128>}]} {
    %c0 = arith.constant 0 : index
    %c0_0 = arith.constant 0 : index
    %0 = vector.load %arg1[%c0, %c0_0] : memref<8x3232xf32, #tpu.memory_space<vmem>>, vector<8x3232xf32>
    %c0_1 = arith.constant 0 : index
    %c0_2 = arith.constant 0 : index
    %1 = vector.load %arg2[%c0_1, %c0_2] : memref<3232x128xf32, #tpu.memory_space<vmem>>, vector<3232x128xf32>
    %cst = arith.constant dense<0.000000e+00> : vector<8x128xf32>
    %2 = tpu.matmul %0, %1, %cst {dimension_numbers = #tpu.dot_dimension_numbers<[1], [0], [0], [1], [0, 0, 1, 1], [], []>} : vector<8x3232xf32>, vector<3232x128xf32>, vector<8x128xf32> -> vector<8x128xf32>
    %c0_3 = arith.constant 0 : index
    %c0_4 = arith.constant 0 : index
    %3 = vector.load %arg3[%c0_3, %c0_4] : memref<1x128xf32, #tpu.memory_space<vmem>>, vector<1x128xf32>
    %4 = vector.broadcast %3 : vector<1x128xf32> to vector<8x128xf32>
    %5 = arith.addf %2, %4 : vector<8x128xf32>
    %cst_5 = arith.constant 0.000000e+00 : f32
    %6 = vector.broadcast %cst_5 : f32 to vector<8x128xf32>
    %7 = arith.subf %6, %5 : vector<8x128xf32>
    %8 = math.exp %7 : vector<8x128xf32>
    %cst_6 = arith.constant 1.000000e+00 : f32
    %9 = vector.broadcast %cst_6 : f32 to vector<8x128xf32>
    %10 = arith.addf %9, %8 : vector<8x128xf32>
    %11 = tpu.reciprocal %10 {approx = true} : vector<8x128xf32> -> vector<8x128xf32>
    %c0_7 = arith.constant 0 : index
    %c0_8 = arith.constant 0 : index
    %12 = vector.load %arg4[%c0_7, %c0_8] : memref<8x128xf32, #tpu.memory_space<vmem>>, vector<8x128xf32>
    tpu.vector_store %arg4[%c0_7, %c0_8], %11 {strides = array<i32>} : memref<8x128xf32, #tpu.memory_space<vmem>>, vector<8x128xf32>,
    return
  }
  func.func @transform_0(%arg0: i32) -> (i32, i32) {
    %c0_i32 = arith.constant 0 : i32
    %c0_i32_0 = arith.constant 0 : i32
    return %arg0, %c0_i32 : i32, i32
  }
  func.func @transform_1(%arg0: i32) -> (i32, i32) {
    %c0_i32 = arith.constant 0 : i32
    %c0_i32_0 = arith.constant 0 : i32
    %c0_i32_1 = arith.constant 0 : i32
    return %c0_i32, %c0_i32_0 : i32, i32
  }
  func.func @transform_2(%arg0: i32) -> (i32, i32) {
    %c0_i32 = arith.constant 0 : i32
    %c0_i32_0 = arith.constant 0 : i32
    %c0_i32_1 = arith.constant 0 : i32
    return %c0_i32, %c0_i32_0 : i32, i32
  }
  func.func @transform_3(%arg0: i32) -> (i32, i32) {
    %c0_i32 = arith.constant 0 : i32
    %c0_i32_0 = arith.constant 0 : i32
    return %arg0, %c0_i32 : i32, i32
  }
}

</mosaic_0001>

<llo_original>
// kernel: tpu_custom_call.1
$region0: #{tpu_custom_call.1}
  #allocation0 [shape = 'u32[]', space=smem, size = 0x4, offset = 0x4, fixed_abs, tag = 'smem constant byte address 0x4 - core index']
  #allocation1 [shape = 'u32[72,128]{1,0:T(1,128)}', space=vmem, size = 0x9000, scoped, tag = 'internal scratch']
  %s0 = inlined_call_operand.hbm [shape: f32[8,3232], index: 0, kind: input, shape index: {}]
  %s1 = inlined_call_operand.hbm [shape: f32[3232,128], index: 1, kind: input, shape index: {}]
  %s2 = inlined_call_operand.hbm [shape: f32[1,128], index: 2, kind: input, shape index: {}]
  %s3 = inlined_call_operand.hbm [shape: f32[8,128], index: 3, kind: output, shape index: {}]
  %s4 = sld [smem:[#allocation0]]
  $region34: #{tpu_custom_call.1} parent=0
    _
  %s6 = ssub.s32 1, %s4
  %s7 = scalar_select 0, %s6, %s4
  $region1: #{tpu_custom_call.1} parent=0
    #allocation2 [shape = 'u8[106496]{0}', space=vmem, size = 0x1a000, scoped, tag = 'input window, operand 0, single buffered']
    #allocation3 [shape = 's32[1]{0}', space=sflag, size = 0x4, scoped, tag = 'scoped memory for tpu_custom_call.1']
    #allocation4 [shape = 's32[1]{0}', space=sflag, size = 0x4, scoped, tag = 'scoped memory for tpu_custom_call.1']
    #allocation5 [shape = 'u8[1654784]{0}', space=vmem, size = 0x194000, scoped, tag = 'input window, operand 1, single buffered']
    #allocation6 [shape = 's32[1]{0}', space=sflag, size = 0x4, scoped, tag = 'scoped memory for tpu_custom_call.1']
    #allocation7 [shape = 'u8[512]{0}', space=vmem, size = 0x400, scoped, tag = 'input window, operand 2, single buffered']
    #allocation8 [shape = 'u8[4096]{0}', space=vmem, size = 0x1000, scoped, tag = 'output window, operand 0, single buffered']
    %8 = vsyncpa [#allocation3], 0
    %9 = vsyncpa [#allocation6], 0
    %10 = vsyncpa [#allocation4], 0
    // Predicated region
    $region2: #{tpu_custom_call.1} parent=1 // pred_check
      _
    $region3: #{tpu_custom_call.1} parent=1 // pred_check_branch
      %12 = sbr.rel (0) target = $region5
    $region4: #{tpu_custom_call.1} parent=1 // pred_region
      %14 = vsyncadd [#allocation3], 0
      %s16 = sshll.u32 %s0, 4
      %s17 = int_to_ptr.hbm [resolvable:$true] %s16
      %s18 = sshll.u32 [#allocation2], 4
      %s19 = int_to_ptr.vmem [resolvable:$true] %s18
      %21 = dma.hbm_to_vmem [thread:$0]  %s17, 3328, %s19, [#allocation3]
    $region5: #{tpu_custom_call.1} parent=1 // pred_fallthru
      _
    // Predicated region
    $region6: #{tpu_custom_call.1} parent=1 // pred_check
      _
    $region7: #{tpu_custom_call.1} parent=1 // pred_check_branch
      %23 = sbr.rel (0) target = $region9
    $region8: #{tpu_custom_call.1} parent=1 // pred_region
      %25 = vsyncadd [#allocation6], 0
      %s26 = sshll.u32 %s1, 4
      %s27 = int_to_ptr.hbm [resolvable:$true] %s26
      %s28 = sshll.u32 [#allocation5], 4
      %s29 = int_to_ptr.vmem [resolvable:$true] %s28
      %34 = dma.hbm_to_vmem [thread:$0]  %s27, 51712, %s29, [#allocation6], 128, 128, 8
    $region9: #{tpu_custom_call.1} parent=1 // pred_fallthru
      _
    // Predicated region
    $region10: #{tpu_custom_call.1} parent=1 // pred_check
      _
    $region11: #{tpu_custom_call.1} parent=1 // pred_check_branch
      %36 = sbr.rel (0) target = $region13
    $region12: #{tpu_custom_call.1} parent=1 // pred_region
      %38 = vsyncadd [#allocation6], 0
      %s40 = sshll.u32 %s2, 4
      %s41 = int_to_ptr.hbm [resolvable:$true] %s40
      %s42 = sshll.u32 [#allocation7], 4
      %s43 = int_to_ptr.vmem [resolvable:$true] %s42
      %45 = dma.hbm_to_vmem [thread:$0]  %s41, 16, %s43, [#allocation6]
    $region13: #{tpu_custom_call.1} parent=1 // pred_fallthru
      _
    // Predicated region
    $region14: #{tpu_custom_call.1} parent=1 // pred_check
      _
    $region15: #{tpu_custom_call.1} parent=1 // pred_check_branch
      %47 = sbr.rel (0) target = $region17
    $region16: #{tpu_custom_call.1} parent=1 // pred_region
      %49 = dma.done [#allocation3], 3328
    $region17: #{tpu_custom_call.1} parent=1 // pred_fallthru
      _
    // Predicated region
    $region18: #{tpu_custom_call.1} parent=1 // pred_check
      _
    $region19: #{tpu_custom_call.1} parent=1 // pred_check_branch
      %51 = sbr.rel (0) target = $region21
    $region20: #{tpu_custom_call.1} parent=1 // pred_region
      %53 = dma.done [#allocation6], 51712
    $region21: #{tpu_custom_call.1} parent=1 // pred_fallthru
      _
    // Predicated region
    $region22: #{tpu_custom_call.1} parent=1 // pred_check
      _
    $region23: #{tpu_custom_call.1} parent=1 // pred_check_branch
      %55 = sbr.rel (0) target = $region25
    $region24: #{tpu_custom_call.1} parent=1 // pred_region
      %57 = dma.done [#allocation6], 16
    $region25: #{tpu_custom_call.1} parent=1 // pred_fallthru
      _
    %v58 = vld [vmem:[#allocation2] sm:$0xff]
    %v59 = vld [vmem:[#allocation2 + $0x8] sm:$0xff]
    %v60 = vld [vmem:[#allocation2 + $0x10] sm:$0xff]
    %v61 = vld [vmem:[#allocation2 + $0x18] sm:$0xff]
    %v62 = vld [vmem:[#allocation2 + $0x20] sm:$0xff]
    %v63 = vld [vmem:[#allocation2 + $0x28] sm:$0xff]
    %v64 = vld [vmem:[#allocation2 + $0x30] sm:$0xff]
    %v65 = vld [vmem:[#allocation2 + $0x38] sm:$0xff]
    %v66 = vld [vmem:[#allocation2 + $0x40] sm:$0xff]
    %v67 = vld [vmem:[#allocation2 + $0x48] sm:$0xff]
    %v68 = vld [vmem:[#allocation2 + $0x50] sm:$0xff]
    %v69 = vld [vmem:[#allocation2 + $0x58] sm:$0xff]
    %v70 = vld [vmem:[#allocation2 + $0x60] sm:$0xff]
    %v71 = vld [vmem:[#allocation2 + $0x68] sm:$0xff]
    %v72 = vld [vmem:[#allocation2 + $0x70] sm:$0xff]
    %v73 = vld [vmem:[#allocation2 + $0x78] sm:$0xff]
    %v74 = vld [vmem:[#allocation2 + $0x80] sm:$0xff]
    %v75 = vld [vmem:[#allocation2 + $0x88] sm:$0xff]
    %v76 = vld [vmem:[#allocation2 + $0x90] sm:$0xff]
    %v77 = vld [vmem:[#allocation2 + $0x98] sm:$0xff]
    %v78 = vld [vmem:[#allocation2 + $0xa0] sm:$0xff]
    %v79 = vld [vmem:[#allocation2 + $0xa8] sm:$0xff]
    %v80 = vld [vmem:[#allocation2 + $0xb0] sm:$0xff]
    %v81 = vld [vmem:[#allocation2 + $0xb8] sm:$0xff]
    %v82 = vld [vmem:[#allocation2 + $0xc0] sm:$0xff]
    %v83 = vld [vmem:[#allocation2 + $0xc8] sm:$0xff]
    %v84 = vld [vmem:[#allocation5] sm:$0xff]
    %v85 = vld [vmem:[#allocation5 + $0x8] sm:$0xff]
    %v86 = vld [vmem:[#allocation5 + $0x10] sm:$0xff]
    %v87 = vld [vmem:[#allocation5 + $0x18] sm:$0xff]
    %v88 = vld [vmem:[#allocation5 + $0x20] sm:$0xff]
    %v89 = vld [vmem:[#allocation5 + $0x28] sm:$0xff]
    %v90 = vld [vmem:[#allocation5 + $0x30] sm:$0xff]
    %v91 = vld [vmem:[#allocation5 + $0x38] sm:$0xff]
    %v92 = vld [vmem:[#allocation5 + $0x40] sm:$0xff]
    %v93 = vld [vmem:[#allocation5 + $0x48] sm:$0xff]
    %v94 = vld [vmem:[#allocation5 + $0x50] sm:$0xff]
    %v95 = vld [vmem:[#allocation5 + $0x58] sm:$0xff]
    %v96 = vld [vmem:[#allocation5 + $0x60] sm:$0xff]
    %v97 = vld [vmem:[#allocation5 + $0x68] sm:$0xff]
    %v98 = vld [vmem:[#allocation5 + $0x70] sm:$0xff]
    %v99 = vld [vmem:[#allocation5 + $0x78] sm:$0xff]
    %v100 = vld [vmem:[#allocation5 + $0x80] sm:$0xff]
    %v101 = vld [vmem:[#allocation5 + $0x88] sm:$0xff]
    %v102 = vld [vmem:[#allocation5 + $0x90] sm:$0xff]
    %v103 = vld [vmem:[#allocation5 + $0x98] sm:$0xff]
    %v104 = vld [vmem:[#allocation5 + $0xa0] sm:$0xff]
    %v105 = vld [vmem:[#allocation5 + $0xa8] sm:$0xff]
    %v106 = vld [vmem:[#allocation5 + $0xb0] sm:$0xff]
    %v107 = vld [vmem:[#allocation5 + $0xb8] sm:$0xff]
    %v108 = vld [vmem:[#allocation5 + $0xc0] sm:$0xff]
    %v109 = vld [vmem:[#allocation5 + $0xc8] sm:$0xff]
    %v110 = vld [vmem:[#allocation5 + $0xd0] sm:$0xff]
    %v111 = vld [vmem:[#allocation5 + $0xd8] sm:$0xff]
    %v112 = vld [vmem:[#allocation5 + $0xe0] sm:$0xff]
    %v113 = vld [vmem:[#allocation5 + $0xe8] sm:$0xff]
    %v114 = vld [vmem:[#allocation5 + $0xf0] sm:$0xff]
    %v115 = vld [vmem:[#allocation5 + $0xf8] sm:$0xff]
    %v116 = vld [vmem:[#allocation5 + $0x100] sm:$0xff]
    %v117 = vld [vmem:[#allocation5 + $0x108] sm:$0xff]
    %v118 = vld [vmem:[#allocation5 + $0x110] sm:$0xff]
    %v119 = vld [vmem:[#allocation5 + $0x118] sm:$0xff]
    %v120 = vld [vmem:[#allocation5 + $0x120] sm:$0xff]
    %v121 = vld [vmem:[#allocation5 + $0x128] sm:$0xff]
    %v122 = vld [vmem:[#allocation5 + $0x130] sm:$0xff]
    %v123 = vld [vmem:[#allocation5 + $0x138] sm:$0xff]
    %v124 = vld [vmem:[#allocation5 + $0x140] sm:$0xff]
    %v125 = vld [vmem:[#allocation5 + $0x148] sm:$0xff]
    %v126 = vld [vmem:[#allocation5 + $0x150] sm:$0xff]
    %v127 = vld [vmem:[#allocation5 + $0x158] sm:$0xff]
    %v128 = vld [vmem:[#allocation5 + $0x160] sm:$0xff]
    %v129 = vld [vmem:[#allocation5 + $0x168] sm:$0xff]
    %v130 = vld [vmem:[#allocation5 + $0x170] sm:$0xff]
    %v131 = vld [vmem:[#allocation5 + $0x178] sm:$0xff]
    %v132 = vld [vmem:[#allocation5 + $0x180] sm:$0xff]
    %v133 = vld [vmem:[#allocation5 + $0x188] sm:$0xff]
    %v134 = vld [vmem:[#allocation5 + $0x190] sm:$0xff]
    %v135 = vld [vmem:[#allocation5 + $0x198] sm:$0xff]
    %v136 = vld [vmem:[#allocation5 + $0x1a0] sm:$0xff]
    %v137 = vld [vmem:[#allocation5 + $0x1a8] sm:$0xff]
    %v138 = vld [vmem:[#allocation5 + $0x1b0] sm:$0xff]
    %v139 = vld [vmem:[#allocation5 + $0x1b8] sm:$0xff]
    %v140 = vld [vmem:[#allocation5 + $0x1c0] sm:$0xff]
    %v141 = vld [vmem:[#allocation5 + $0x1c8] sm:$0xff]
    %v142 = vld [vmem:[#allocation5 + $0x1d0] sm:$0xff]
    %v143 = vld [vmem:[#allocation5 + $0x1d8] sm:$0xff]
    %v144 = vld [vmem:[#allocation5 + $0x1e0] sm:$0xff]
    %v145 = vld [vmem:[#allocation5 + $0x1e8] sm:$0xff]
    %v146 = vld [vmem:[#allocation5 + $0x1f0] sm:$0xff]
    %v147 = vld [vmem:[#allocation5 + $0x1f8] sm:$0xff]
    %v148 = vld [vmem:[#allocation5 + $0x200] sm:$0xff]
    %v149 = vld [vmem:[#allocation5 + $0x208] sm:$0xff]
    %v150 = vld [vmem:[#allocation5 + $0x210] sm:$0xff]
    %v151 = vld [vmem:[#allocation5 + $0x218] sm:$0xff]
    %v152 = vld [vmem:[#allocation5 + $0x220] sm:$0xff]
    %v153 = vld [vmem:[#allocation5 + $0x228] sm:$0xff]
    %v154 = vld [vmem:[#allocation5 + $0x230] sm:$0xff]
    %v155 = vld [vmem:[#allocation5 + $0x238] sm:$0xff]
    %v156 = vld [vmem:[#allocation5 + $0x240] sm:$0xff]
    %v157 = vld [vmem:[#allocation5 + $0x248] sm:$0xff]
    %v158 = vld [vmem:[#allocation5 + $0x250] sm:$0xff]
    %v159 = vld [vmem:[#allocation5 + $0x258] sm:$0xff]
    %v160 = vld [vmem:[#allocation5 + $0x260] sm:$0xff]
    %v161 = vld [vmem:[#allocation5 + $0x268] sm:$0xff]
    %v162 = vld [vmem:[#allocation5 + $0x270] sm:$0xff]
    %v163 = vld [vmem:[#allocation5 + $0x278] sm:$0xff]
    %v164 = vld [vmem:[#allocation5 + $0x280] sm:$0xff]
    %v165 = vld [vmem:[#allocation5 + $0x288] sm:$0xff]
    %v166 = vld [vmem:[#allocation5 + $0x290] sm:$0xff]
    %v167 = vld [vmem:[#allocation5 + $0x298] sm:$0xff]
    %v168 = vld [vmem:[#allocation5 + $0x2a0] sm:$0xff]
    %v169 = vld [vmem:[#allocation5 + $0x2a8] sm:$0xff]
    %v170 = vld [vmem:[#allocation5 + $0x2b0] sm:$0xff]
    %v171 = vld [vmem:[#allocation5 + $0x2b8] sm:$0xff]
    %v172 = vld [vmem:[#allocation5 + $0x2c0] sm:$0xff]
    %v173 = vld [vmem:[#allocation5 + $0x2c8] sm:$0xff]
    %v174 = vld [vmem:[#allocation5 + $0x2d0] sm:$0xff]
    %v175 = vld [vmem:[#allocation5 + $0x2d8] sm:$0xff]
    %v176 = vld [vmem:[#allocation5 + $0x2e0] sm:$0xff]
    %v177 = vld [vmem:[#allocation5 + $0x2e8] sm:$0xff]
    %v178 = vld [vmem:[#allocation5 + $0x2f0] sm:$0xff]
    %v179 = vld [vmem:[#allocation5 + $0x2f8] sm:$0xff]
    %v180 = vld [vmem:[#allocation5 + $0x300] sm:$0xff]
    %v181 = vld [vmem:[#allocation5 + $0x308] sm:$0xff]
    %v182 = vld [vmem:[#allocation5 + $0x310] sm:$0xff]
    %v183 = vld [vmem:[#allocation5 + $0x318] sm:$0xff]
    %v184 = vld [vmem:[#allocation5 + $0x320] sm:$0xff]
    %v185 = vld [vmem:[#allocation5 + $0x328] sm:$0xff]
    %v186 = vld [vmem:[#allocation5 + $0x330] sm:$0xff]
    %v187 = vld [vmem:[#allocation5 + $0x338] sm:$0xff]
    %v188 = vld [vmem:[#allocation5 + $0x340] sm:$0xff]
    %v189 = vld [vmem:[#allocation5 + $0x348] sm:$0xff]
    %v190 = vld [vmem:[#allocation5 + $0x350] sm:$0xff]
    %v191 = vld [vmem:[#allocation5 + $0x358] sm:$0xff]
    %v192 = vld [vmem:[#allocation5 + $0x360] sm:$0xff]
    %v193 = vld [vmem:[#allocation5 + $0x368] sm:$0xff]
    %v194 = vld [vmem:[#allocation5 + $0x370] sm:$0xff]
    %v195 = vld [vmem:[#allocation5 + $0x378] sm:$0xff]
    %v196 = vld [vmem:[#allocation5 + $0x380] sm:$0xff]
    %v197 = vld [vmem:[#allocation5 + $0x388] sm:$0xff]
    %v198 = vld [vmem:[#allocation5 + $0x390] sm:$0xff]
    %v199 = vld [vmem:[#allocation5 + $0x398] sm:$0xff]
    %v200 = vld [vmem:[#allocation5 + $0x3a0] sm:$0xff]
    %v201 = vld [vmem:[#allocation5 + $0x3a8] sm:$0xff]
    %v202 = vld [vmem:[#allocation5 + $0x3b0] sm:$0xff]
    %v203 = vld [vmem:[#allocation5 + $0x3b8] sm:$0xff]
    %v204 = vld [vmem:[#allocation5 + $0x3c0] sm:$0xff]
    %v205 = vld [vmem:[#allocation5 + $0x3c8] sm:$0xff]
    %v206 = vld [vmem:[#allocation5 + $0x3d0] sm:$0xff]
    %v207 = vld [vmem:[#allocation5 + $0x3d8] sm:$0xff]
    %v208 = vld [vmem:[#allocation5 + $0x3e0] sm:$0xff]
    %v209 = vld [vmem:[#allocation5 + $0x3e8] sm:$0xff]
    %v210 = vld [vmem:[#allocation5 + $0x3f0] sm:$0xff]
    %v211 = vld [vmem:[#allocation5 + $0x3f8] sm:$0xff]
    %v212 = vld [vmem:[#allocation5 + $0x400] sm:$0xff]
    %v213 = vld [vmem:[#allocation5 + $0x408] sm:$0xff]
    %v214 = vld [vmem:[#allocation5 + $0x410] sm:$0xff]
    %v215 = vld [vmem:[#allocation5 + $0x418] sm:$0xff]
    %v216 = vld [vmem:[#allocation5 + $0x420] sm:$0xff]
    %v217 = vld [vmem:[#allocation5 + $0x428] sm:$0xff]
    %v218 = vld [vmem:[#allocation5 + $0x430] sm:$0xff]
    %v219 = vld [vmem:[#allocation5 + $0x438] sm:$0xff]
    %v220 = vld [vmem:[#allocation5 + $0x440] sm:$0xff]
    %v221 = vld [vmem:[#allocation5 + $0x448] sm:$0xff]
    %v222 = vld [vmem:[#allocation5 + $0x450] sm:$0xff]
    %v223 = vld [vmem:[#allocation5 + $0x458] sm:$0xff]
    %v224 = vld [vmem:[#allocation5 + $0x460] sm:$0xff]
    %v225 = vld [vmem:[#allocation5 + $0x468] sm:$0xff]
    %v226 = vld [vmem:[#allocation5 + $0x470] sm:$0xff]
    %v227 = vld [vmem:[#allocation5 + $0x478] sm:$0xff]
    %v228 = vld [vmem:[#allocation5 + $0x480] sm:$0xff]
    %v229 = vld [vmem:[#allocation5 + $0x488] sm:$0xff]
    %v230 = vld [vmem:[#allocation5 + $0x490] sm:$0xff]
    %v231 = vld [vmem:[#allocation5 + $0x498] sm:$0xff]
    %v232 = vld [vmem:[#allocation5 + $0x4a0] sm:$0xff]
    %v233 = vld [vmem:[#allocation5 + $0x4a8] sm:$0xff]
    %v234 = vld [vmem:[#allocation5 + $0x4b0] sm:$0xff]
    %v235 = vld [vmem:[#allocation5 + $0x4b8] sm:$0xff]
    %v236 = vld [vmem:[#allocation5 + $0x4c0] sm:$0xff]
    %v237 = vld [vmem:[#allocation5 + $0x4c8] sm:$0xff]
    %v238 = vld [vmem:[#allocation5 + $0x4d0] sm:$0xff]
    %v239 = vld [vmem:[#allocation5 + $0x4d8] sm:$0xff]
    %v240 = vld [vmem:[#allocation5 + $0x4e0] sm:$0xff]
    %v241 = vld [vmem:[#allocation5 + $0x4e8] sm:$0xff]
    %v242 = vld [vmem:[#allocation5 + $0x4f0] sm:$0xff]
    %v243 = vld [vmem:[#allocation5 + $0x4f8] sm:$0xff]
    %v244 = vld [vmem:[#allocation5 + $0x500] sm:$0xff]
    %v245 = vld [vmem:[#allocation5 + $0x508] sm:$0xff]
    %v246 = vld [vmem:[#allocation5 + $0x510] sm:$0xff]
    %v247 = vld [vmem:[#allocation5 + $0x518] sm:$0xff]
    %v248 = vld [vmem:[#allocation5 + $0x520] sm:$0xff]
    %v249 = vld [vmem:[#allocation5 + $0x528] sm:$0xff]
    %v250 = vld [vmem:[#allocation5 + $0x530] sm:$0xff]
    %v251 = vld [vmem:[#allocation5 + $0x538] sm:$0xff]
    %v252 = vld [vmem:[#allocation5 + $0x540] sm:$0xff]
    %v253 = vld [vmem:[#allocation5 + $0x548] sm:$0xff]
    %v254 = vld [vmem:[#allocation5 + $0x550] sm:$0xff]
    %v255 = vld [vmem:[#allocation5 + $0x558] sm:$0xff]
    %v256 = vld [vmem:[#allocation5 + $0x560] sm:$0xff]
    %v257 = vld [vmem:[#allocation5 + $0x568] sm:$0xff]
    %v258 = vld [vmem:[#allocation5 + $0x570] sm:$0xff]
    %v259 = vld [vmem:[#allocation5 + $0x578] sm:$0xff]
    %v260 = vld [vmem:[#allocation5 + $0x580] sm:$0xff]
    %v261 = vld [vmem:[#allocation5 + $0x588] sm:$0xff]
    %v262 = vld [vmem:[#allocation5 + $0x590] sm:$0xff]
    %v263 = vld [vmem:[#allocation5 + $0x598] sm:$0xff]
    %v264 = vld [vmem:[#allocation5 + $0x5a0] sm:$0xff]
    %v265 = vld [vmem:[#allocation5 + $0x5a8] sm:$0xff]
    %v266 = vld [vmem:[#allocation5 + $0x5b0] sm:$0xff]
    %v267 = vld [vmem:[#allocation5 + $0x5b8] sm:$0xff]
    %v268 = vld [vmem:[#allocation5 + $0x5c0] sm:$0xff]
    %v269 = vld [vmem:[#allocation5 + $0x5c8] sm:$0xff]
    %v270 = vld [vmem:[#allocation5 + $0x5d0] sm:$0xff]
    %v271 = vld [vmem:[#allocation5 + $0x5d8] sm:$0xff]
    %v272 = vld [vmem:[#allocation5 + $0x5e0] sm:$0xff]
    %v273 = vld [vmem:[#allocation5 + $0x5e8] sm:$0xff]
    %v274 = vld [vmem:[#allocation5 + $0x5f0] sm:$0xff]
    %v275 = vld [vmem:[#allocation5 + $0x5f8] sm:$0xff]
    %v276 = vld [vmem:[#allocation5 + $0x600] sm:$0xff]
    %v277 = vld [vmem:[#allocation5 + $0x608] sm:$0xff]
    %v278 = vld [vmem:[#allocation5 + $0x610] sm:$0xff]
    %v279 = vld [vmem:[#allocation5 + $0x618] sm:$0xff]
    %v280 = vld [vmem:[#allocation5 + $0x620] sm:$0xff]
    %v281 = vld [vmem:[#allocation5 + $0x628] sm:$0xff]
    %v282 = vld [vmem:[#allocation5 + $0x630] sm:$0xff]
    %v283 = vld [vmem:[#allocation5 + $0x638] sm:$0xff]
    %v284 = vld [vmem:[#allocation5 + $0x640] sm:$0xff]
    %v285 = vld [vmem:[#allocation5 + $0x648] sm:$0xff]
    %v286 = vld [vmem:[#allocation5 + $0x650] sm:$0xff]
    %v287 = vld [vmem:[#allocation5 + $0x658] sm:$0xff]
    %v288 = vld [vmem:[#allocation5 + $0x660] sm:$0xff]
    %v289 = vld [vmem:[#allocation5 + $0x668] sm:$0xff]
    %v290 = vld [vmem:[#allocation5 + $0x670] sm:$0xff]
    %v291 = vld [vmem:[#allocation5 + $0x678] sm:$0xff]
    %v292 = vld [vmem:[#allocation5 + $0x680] sm:$0xff]
    %v293 = vld [vmem:[#allocation5 + $0x688] sm:$0xff]
    %v294 = vld [vmem:[#allocation5 + $0x690] sm:$0xff]
    %v295 = vld [vmem:[#allocation5 + $0x698] sm:$0xff]
    %v296 = vld [vmem:[#allocation5 + $0x6a0] sm:$0xff]
    %v297 = vld [vmem:[#allocation5 + $0x6a8] sm:$0xff]
    %v298 = vld [vmem:[#allocation5 + $0x6b0] sm:$0xff]
    %v299 = vld [vmem:[#allocation5 + $0x6b8] sm:$0xff]
    %v300 = vld [vmem:[#allocation5 + $0x6c0] sm:$0xff]
    %v301 = vld [vmem:[#allocation5 + $0x6c8] sm:$0xff]
    %v302 = vld [vmem:[#allocation5 + $0x6d0] sm:$0xff]
    %v303 = vld [vmem:[#allocation5 + $0x6d8] sm:$0xff]
    %v304 = vld [vmem:[#allocation5 + $0x6e0] sm:$0xff]
    %v305 = vld [vmem:[#allocation5 + $0x6e8] sm:$0xff]
    %v306 = vld [vmem:[#allocation5 + $0x6f0] sm:$0xff]
    %v307 = vld [vmem:[#allocation5 + $0x6f8] sm:$0xff]
    %v308 = vld [vmem:[#allocation5 + $0x700] sm:$0xff]
    %v309 = vld [vmem:[#allocation5 + $0x708] sm:$0xff]
    %v310 = vld [vmem:[#allocation5 + $0x710] sm:$0xff]
    %v311 = vld [vmem:[#allocation5 + $0x718] sm:$0xff]
    %v312 = vld [vmem:[#allocation5 + $0x720] sm:$0xff]
    %v313 = vld [vmem:[#allocation5 + $0x728] sm:$0xff]
    %v314 = vld [vmem:[#allocation5 + $0x730] sm:$0xff]
    %v315 = vld [vmem:[#allocation5 + $0x738] sm:$0xff]
    %v316 = vld [vmem:[#allocation5 + $0x740] sm:$0xff]
    %v317 = vld [vmem:[#allocation5 + $0x748] sm:$0xff]
    %v318 = vld [vmem:[#allocation5 + $0x750] sm:$0xff]
    %v319 = vld [vmem:[#allocation5 + $0x758] sm:$0xff]
    %v320 = vld [vmem:[#allocation5 + $0x760] sm:$0xff]
    %v321 = vld [vmem:[#allocation5 + $0x768] sm:$0xff]
    %v322 = vld [vmem:[#allocation5 + $0x770] sm:$0xff]
    %v323 = vld [vmem:[#allocation5 + $0x778] sm:$0xff]
    %v324 = vld [vmem:[#allocation5 + $0x780] sm:$0xff]
    %v325 = vld [vmem:[#allocation5 + $0x788] sm:$0xff]
    %v326 = vld [vmem:[#allocation5 + $0x790] sm:$0xff]
    %v327 = vld [vmem:[#allocation5 + $0x798] sm:$0xff]
    %v328 = vld [vmem:[#allocation5 + $0x7a0] sm:$0xff]
    %v329 = vld [vmem:[#allocation5 + $0x7a8] sm:$0xff]
    %v330 = vld [vmem:[#allocation5 + $0x7b0] sm:$0xff]
    %v331 = vld [vmem:[#allocation5 + $0x7b8] sm:$0xff]
    %v332 = vld [vmem:[#allocation5 + $0x7c0] sm:$0xff]
    %v333 = vld [vmem:[#allocation5 + $0x7c8] sm:$0xff]
    %v334 = vld [vmem:[#allocation5 + $0x7d0] sm:$0xff]
    %v335 = vld [vmem:[#allocation5 + $0x7d8] sm:$0xff]
    %v336 = vld [vmem:[#allocation5 + $0x7e0] sm:$0xff]
    %v337 = vld [vmem:[#allocation5 + $0x7e8] sm:$0xff]
    %v338 = vld [vmem:[#allocation5 + $0x7f0] sm:$0xff]
    %v339 = vld [vmem:[#allocation5 + $0x7f8] sm:$0xff]
    %v340 = vld [vmem:[#allocation5 + $0x800] sm:$0xff]
    %v341 = vld [vmem:[#allocation5 + $0x808] sm:$0xff]
    %v342 = vld [vmem:[#allocation5 + $0x810] sm:$0xff]
    %v343 = vld [vmem:[#allocation5 + $0x818] sm:$0xff]
    %v344 = vld [vmem:[#allocation5 + $0x820] sm:$0xff]
    %v345 = vld [vmem:[#allocation5 + $0x828] sm:$0xff]
    %v346 = vld [vmem:[#allocation5 + $0x830] sm:$0xff]
    %v347 = vld [vmem:[#allocation5 + $0x838] sm:$0xff]
    %v348 = vld [vmem:[#allocation5 + $0x840] sm:$0xff]
    %v349 = vld [vmem:[#allocation5 + $0x848] sm:$0xff]
    %v350 = vld [vmem:[#allocation5 + $0x850] sm:$0xff]
    %v351 = vld [vmem:[#allocation5 + $0x858] sm:$0xff]
    %v352 = vld [vmem:[#allocation5 + $0x860] sm:$0xff]
    %v353 = vld [vmem:[#allocation5 + $0x868] sm:$0xff]
    %v354 = vld [vmem:[#allocation5 + $0x870] sm:$0xff]
    %v355 = vld [vmem:[#allocation5 + $0x878] sm:$0xff]
    %v356 = vld [vmem:[#allocation5 + $0x880] sm:$0xff]
    %v357 = vld [vmem:[#allocation5 + $0x888] sm:$0xff]
    %v358 = vld [vmem:[#allocation5 + $0x890] sm:$0xff]
    %v359 = vld [vmem:[#allocation5 + $0x898] sm:$0xff]
    %v360 = vld [vmem:[#allocation5 + $0x8a0] sm:$0xff]
    %v361 = vld [vmem:[#allocation5 + $0x8a8] sm:$0xff]
    %v362 = vld [vmem:[#allocation5 + $0x8b0] sm:$0xff]
    %v363 = vld [vmem:[#allocation5 + $0x8b8] sm:$0xff]
    %v364 = vld [vmem:[#allocation5 + $0x8c0] sm:$0xff]
    %v365 = vld [vmem:[#allocation5 + $0x8c8] sm:$0xff]
    %v366 = vld [vmem:[#allocation5 + $0x8d0] sm:$0xff]
    %v367 = vld [vmem:[#allocation5 + $0x8d8] sm:$0xff]
    %v368 = vld [vmem:[#allocation5 + $0x8e0] sm:$0xff]
    %v369 = vld [vmem:[#allocation5 + $0x8e8] sm:$0xff]
    %v370 = vld [vmem:[#allocation5 + $0x8f0] sm:$0xff]
    %v371 = vld [vmem:[#allocation5 + $0x8f8] sm:$0xff]
    %v372 = vld [vmem:[#allocation5 + $0x900] sm:$0xff]
    %v373 = vld [vmem:[#allocation5 + $0x908] sm:$0xff]
    %v374 = vld [vmem:[#allocation5 + $0x910] sm:$0xff]
    %v375 = vld [vmem:[#allocation5 + $0x918] sm:$0xff]
    %v376 = vld [vmem:[#allocation5 + $0x920] sm:$0xff]
    %v377 = vld [vmem:[#allocation5 + $0x928] sm:$0xff]
    %v378 = vld [vmem:[#allocation5 + $0x930] sm:$0xff]
    %v379 = vld [vmem:[#allocation5 + $0x938] sm:$0xff]
    %v380 = vld [vmem:[#allocation5 + $0x940] sm:$0xff]
    %v381 = vld [vmem:[#allocation5 + $0x948] sm:$0xff]
    %v382 = vld [vmem:[#allocation5 + $0x950] sm:$0xff]
    %v383 = vld [vmem:[#allocation5 + $0x958] sm:$0xff]
    %v384 = vld [vmem:[#allocation5 + $0x960] sm:$0xff]
    %v385 = vld [vmem:[#allocation5 + $0x968] sm:$0xff]
    %v386 = vld [vmem:[#allocation5 + $0x970] sm:$0xff]
    %v387 = vld [vmem:[#allocation5 + $0x978] sm:$0xff]
    %v388 = vld [vmem:[#allocation5 + $0x980] sm:$0xff]
    %v389 = vld [vmem:[#allocation5 + $0x988] sm:$0xff]
    %v390 = vld [vmem:[#allocation5 + $0x990] sm:$0xff]
    %v391 = vld [vmem:[#allocation5 + $0x998] sm:$0xff]
    %v392 = vld [vmem:[#allocation5 + $0x9a0] sm:$0xff]
    %v393 = vld [vmem:[#allocation5 + $0x9a8] sm:$0xff]
    %v394 = vld [vmem:[#allocation5 + $0x9b0] sm:$0xff]
    %v395 = vld [vmem:[#allocation5 + $0x9b8] sm:$0xff]
    %v396 = vld [vmem:[#allocation5 + $0x9c0] sm:$0xff]
    %v397 = vld [vmem:[#allocation5 + $0x9c8] sm:$0xff]
    %v398 = vld [vmem:[#allocation5 + $0x9d0] sm:$0xff]
    %v399 = vld [vmem:[#allocation5 + $0x9d8] sm:$0xff]
    %v400 = vld [vmem:[#allocation5 + $0x9e0] sm:$0xff]
    %v401 = vld [vmem:[#allocation5 + $0x9e8] sm:$0xff]
    %v402 = vld [vmem:[#allocation5 + $0x9f0] sm:$0xff]
    %v403 = vld [vmem:[#allocation5 + $0x9f8] sm:$0xff]
    %v404 = vld [vmem:[#allocation5 + $0xa00] sm:$0xff]
    %v405 = vld [vmem:[#allocation5 + $0xa08] sm:$0xff]
    %v406 = vld [vmem:[#allocation5 + $0xa10] sm:$0xff]
    %v407 = vld [vmem:[#allocation5 + $0xa18] sm:$0xff]
    %v408 = vld [vmem:[#allocation5 + $0xa20] sm:$0xff]
    %v409 = vld [vmem:[#allocation5 + $0xa28] sm:$0xff]
    %v410 = vld [vmem:[#allocation5 + $0xa30] sm:$0xff]
    %v411 = vld [vmem:[#allocation5 + $0xa38] sm:$0xff]
    %v412 = vld [vmem:[#allocation5 + $0xa40] sm:$0xff]
    %v413 = vld [vmem:[#allocation5 + $0xa48] sm:$0xff]
    %v414 = vld [vmem:[#allocation5 + $0xa50] sm:$0xff]
    %v415 = vld [vmem:[#allocation5 + $0xa58] sm:$0xff]
    %v416 = vld [vmem:[#allocation5 + $0xa60] sm:$0xff]
    %v417 = vld [vmem:[#allocation5 + $0xa68] sm:$0xff]
    %v418 = vld [vmem:[#allocation5 + $0xa70] sm:$0xff]
    %v419 = vld [vmem:[#allocation5 + $0xa78] sm:$0xff]
    %v420 = vld [vmem:[#allocation5 + $0xa80] sm:$0xff]
    %v421 = vld [vmem:[#allocation5 + $0xa88] sm:$0xff]
    %v422 = vld [vmem:[#allocation5 + $0xa90] sm:$0xff]
    %v423 = vld [vmem:[#allocation5 + $0xa98] sm:$0xff]
    %v424 = vld [vmem:[#allocation5 + $0xaa0] sm:$0xff]
    %v425 = vld [vmem:[#allocation5 + $0xaa8] sm:$0xff]
    %v426 = vld [vmem:[#allocation5 + $0xab0] sm:$0xff]
    %v427 = vld [vmem:[#allocation5 + $0xab8] sm:$0xff]
    %v428 = vld [vmem:[#allocation5 + $0xac0] sm:$0xff]
    %v429 = vld [vmem:[#allocation5 + $0xac8] sm:$0xff]
    %v430 = vld [vmem:[#allocation5 + $0xad0] sm:$0xff]
    %v431 = vld [vmem:[#allocation5 + $0xad8] sm:$0xff]
    %v432 = vld [vmem:[#allocation5 + $0xae0] sm:$0xff]
    %v433 = vld [vmem:[#allocation5 + $0xae8] sm:$0xff]
    %v434 = vld [vmem:[#allocation5 + $0xaf0] sm:$0xff]
    %v435 = vld [vmem:[#allocation5 + $0xaf8] sm:$0xff]
    %v436 = vld [vmem:[#allocation5 + $0xb00] sm:$0xff]
    %v437 = vld [vmem:[#allocation5 + $0xb08] sm:$0xff]
    %v438 = vld [vmem:[#allocation5 + $0xb10] sm:$0xff]
    %v439 = vld [vmem:[#allocation5 + $0xb18] sm:$0xff]
    %v440 = vld [vmem:[#allocation5 + $0xb20] sm:$0xff]
    %v441 = vld [vmem:[#allocation5 + $0xb28] sm:$0xff]
    %v442 = vld [vmem:[#allocation5 + $0xb30] sm:$0xff]
    %v443 = vld [vmem:[#allocation5 + $0xb38] sm:$0xff]
    %v444 = vld [vmem:[#allocation5 + $0xb40] sm:$0xff]
    %v445 = vld [vmem:[#allocation5 + $0xb48] sm:$0xff]
    %v446 = vld [vmem:[#allocation5 + $0xb50] sm:$0xff]
    %v447 = vld [vmem:[#allocation5 + $0xb58] sm:$0xff]
    %v448 = vld [vmem:[#allocation5 + $0xb60] sm:$0xff]
    %v449 = vld [vmem:[#allocation5 + $0xb68] sm:$0xff]
    %v450 = vld [vmem:[#allocation5 + $0xb70] sm:$0xff]
    %v451 = vld [vmem:[#allocation5 + $0xb78] sm:$0xff]
    %v452 = vld [vmem:[#allocation5 + $0xb80] sm:$0xff]
    %v453 = vld [vmem:[#allocation5 + $0xb88] sm:$0xff]
    %v454 = vld [vmem:[#allocation5 + $0xb90] sm:$0xff]
    %v455 = vld [vmem:[#allocation5 + $0xb98] sm:$0xff]
    %v456 = vld [vmem:[#allocation5 + $0xba0] sm:$0xff]
    %v457 = vld [vmem:[#allocation5 + $0xba8] sm:$0xff]
    %v458 = vld [vmem:[#allocation5 + $0xbb0] sm:$0xff]
    %v459 = vld [vmem:[#allocation5 + $0xbb8] sm:$0xff]
    %v460 = vld [vmem:[#allocation5 + $0xbc0] sm:$0xff]
    %v461 = vld [vmem:[#allocation5 + $0xbc8] sm:$0xff]
    %v462 = vld [vmem:[#allocation5 + $0xbd0] sm:$0xff]
    %v463 = vld [vmem:[#allocation5 + $0xbd8] sm:$0xff]
    %v464 = vld [vmem:[#allocation5 + $0xbe0] sm:$0xff]
    %v465 = vld [vmem:[#allocation5 + $0xbe8] sm:$0xff]
    %v466 = vld [vmem:[#allocation5 + $0xbf0] sm:$0xff]
    %v467 = vld [vmem:[#allocation5 + $0xbf8] sm:$0xff]
    %v468 = vld [vmem:[#allocation5 + $0xc00] sm:$0xff]
    %v469 = vld [vmem:[#allocation5 + $0xc08] sm:$0xff]
    %v470 = vld [vmem:[#allocation5 + $0xc10] sm:$0xff]
    %v471 = vld [vmem:[#allocation5 + $0xc18] sm:$0xff]
    %v472 = vld [vmem:[#allocation5 + $0xc20] sm:$0xff]
    %v473 = vld [vmem:[#allocation5 + $0xc28] sm:$0xff]
    %v474 = vld [vmem:[#allocation5 + $0xc30] sm:$0xff]
    %v475 = vld [vmem:[#allocation5 + $0xc38] sm:$0xff]
    %v476 = vld [vmem:[#allocation5 + $0xc40] sm:$0xff]
    %v477 = vld [vmem:[#allocation5 + $0xc48] sm:$0xff]
    %v478 = vld [vmem:[#allocation5 + $0xc50] sm:$0xff]
    %v479 = vld [vmem:[#allocation5 + $0xc58] sm:$0xff]
    %v480 = vld [vmem:[#allocation5 + $0xc60] sm:$0xff]
    %v481 = vld [vmem:[#allocation5 + $0xc68] sm:$0xff]
    %v482 = vld [vmem:[#allocation5 + $0xc70] sm:$0xff]
    %v483 = vld [vmem:[#allocation5 + $0xc78] sm:$0xff]
    %v484 = vld [vmem:[#allocation5 + $0xc80] sm:$0xff]
    %v485 = vld [vmem:[#allocation5 + $0xc88] sm:$0xff]
    %v486 = vld [vmem:[#allocation5 + $0xc90] sm:$0xff]
    %v487 = vld [vmem:[#allocation5 + $0xc98] sm:$0xff]
    %v488 = vld [vmem:[#allocation7] sm:$0x1]
    %v490 = vperm.slane %v488, 0
    %vm492 = vcmask 261120
    %v494 = vsel %vm492, %v83, 0
    %496 = vmatpush.msra.mxu0 %v99
    %497 = vmatpush.msra.mxu0 %v98
    %498 = vmatpush.msra.mxu0 %v97
    %499 = vmatpush.msra.mxu0 %v96
    %500 = vmatpush.msra.mxu0 %v95
    %501 = vmatpush.msra.mxu0 %v94
    %502 = vmatpush.msra.mxu0 %v93
    %503 = vmatpush.msra.mxu0 %v92
    %504 = vmatpush.msra.mxu0 %v91
    %505 = vmatpush.msra.mxu0 %v90
    %506 = vmatpush.msra.mxu0 %v89
    %507 = vmatpush.msra.mxu0 %v88
    %508 = vmatpush.msra.mxu0 %v87
    %509 = vmatpush.msra.mxu0 %v86
    %510 = vmatpush.msra.mxu0 %v85
    %511 = vmatpush.msra.mxu0 %v84
    %512 = vmatmul.f32.gmra.mxu0 %v58
    %v513 = vpop.f32.mrf.mxu0
    %v514 = vadd.f32 %v490, %v513
    %515 = vdwg.mxu0
    %516 = vmatpush.msra.mxu0 %v115
    %517 = vmatpush.msra.mxu0 %v114
    %518 = vmatpush.msra.mxu0 %v113
    %519 = vmatpush.msra.mxu0 %v112
    %520 = vmatpush.msra.mxu0 %v111
    %521 = vmatpush.msra.mxu0 %v110
    %522 = vmatpush.msra.mxu0 %v109
    %523 = vmatpush.msra.mxu0 %v108
    %524 = vmatpush.msra.mxu0 %v107
    %525 = vmatpush.msra.mxu0 %v106
    %526 = vmatpush.msra.mxu0 %v105
    %527 = vmatpush.msra.mxu0 %v104
    %528 = vmatpush.msra.mxu0 %v103
    %529 = vmatpush.msra.mxu0 %v102
    %530 = vmatpush.msra.mxu0 %v101
    %531 = vmatpush.msra.mxu0 %v100
    %532 = vmatmul.f32.gmra.mxu0 %v59
    %v533 = vpop.f32.mrf.mxu0
    %v534 = vadd.f32 %v514, %v533
    %535 = vdwg.mxu0
    %536 = vmatpush.msra.mxu0 %v131
    %537 = vmatpush.msra.mxu0 %v130
    %538 = vmatpush.msra.mxu0 %v129
    %539 = vmatpush.msra.mxu0 %v128
    %540 = vmatpush.msra.mxu0 %v127
    %541 = vmatpush.msra.mxu0 %v126
    %542 = vmatpush.msra.mxu0 %v125
    %543 = vmatpush.msra.mxu0 %v124
    %544 = vmatpush.msra.mxu0 %v123
    %545 = vmatpush.msra.mxu0 %v122
    %546 = vmatpush.msra.mxu0 %v121
    %547 = vmatpush.msra.mxu0 %v120
    %548 = vmatpush.msra.mxu0 %v119
    %549 = vmatpush.msra.mxu0 %v118
    %550 = vmatpush.msra.mxu0 %v117
    %551 = vmatpush.msra.mxu0 %v116
    %552 = vmatmul.f32.gmra.mxu0 %v60
    %v553 = vpop.f32.mrf.mxu0
    %v554 = vadd.f32 %v534, %v553
    %555 = vdwg.mxu0
    %556 = vmatpush.msra.mxu0 %v147
    %557 = vmatpush.msra.mxu0 %v146
    %558 = vmatpush.msra.mxu0 %v145
    %559 = vmatpush.msra.mxu0 %v144
    %560 = vmatpush.msra.mxu0 %v143
    %561 = vmatpush.msra.mxu0 %v142
    %562 = vmatpush.msra.mxu0 %v141
    %563 = vmatpush.msra.mxu0 %v140
    %564 = vmatpush.msra.mxu0 %v139
    %565 = vmatpush.msra.mxu0 %v138
    %566 = vmatpush.msra.mxu0 %v137
    %567 = vmatpush.msra.mxu0 %v136
    %568 = vmatpush.msra.mxu0 %v135
    %569 = vmatpush.msra.mxu0 %v134
    %570 = vmatpush.msra.mxu0 %v133
    %571 = vmatpush.msra.mxu0 %v132
    %572 = vmatmul.f32.gmra.mxu0 %v61
    %v573 = vpop.f32.mrf.mxu0
    %v574 = vadd.f32 %v554, %v573
    %575 = vdwg.mxu0
    %576 = vmatpush.msra.mxu0 %v163
    %577 = vmatpush.msra.mxu0 %v162
    %578 = vmatpush.msra.mxu0 %v161
    %579 = vmatpush.msra.mxu0 %v160
    %580 = vmatpush.msra.mxu0 %v159
    %581 = vmatpush.msra.mxu0 %v158
    %582 = vmatpush.msra.mxu0 %v157
    %583 = vmatpush.msra.mxu0 %v156
    %584 = vmatpush.msra.mxu0 %v155
    %585 = vmatpush.msra.mxu0 %v154
    %586 = vmatpush.msra.mxu0 %v153
    %587 = vmatpush.msra.mxu0 %v152
    %588 = vmatpush.msra.mxu0 %v151
    %589 = vmatpush.msra.mxu0 %v150
    %590 = vmatpush.msra.mxu0 %v149
    %591 = vmatpush.msra.mxu0 %v148
    %592 = vmatmul.f32.gmra.mxu0 %v62
    %v593 = vpop.f32.mrf.mxu0
    %v594 = vadd.f32 %v574, %v593
    %595 = vdwg.mxu0
    %596 = vmatpush.msra.mxu0 %v179
    %597 = vmatpush.msra.mxu0 %v178
    %598 = vmatpush.msra.mxu0 %v177
    %599 = vmatpush.msra.mxu0 %v176
    %600 = vmatpush.msra.mxu0 %v175
    %601 = vmatpush.msra.mxu0 %v174
    %602 = vmatpush.msra.mxu0 %v173
    %603 = vmatpush.msra.mxu0 %v172
    %604 = vmatpush.msra.mxu0 %v171
    %605 = vmatpush.msra.mxu0 %v170
    %606 = vmatpush.msra.mxu0 %v169
    %607 = vmatpush.msra.mxu0 %v168
    %608 = vmatpush.msra.mxu0 %v167
    %609 = vmatpush.msra.mxu0 %v166
    %610 = vmatpush.msra.mxu0 %v165
    %611 = vmatpush.msra.mxu0 %v164
    %612 = vmatmul.f32.gmra.mxu0 %v63
    %v613 = vpop.f32.mrf.mxu0
    %v614 = vadd.f32 %v594, %v613
    %615 = vdwg.mxu0
    %616 = vmatpush.msra.mxu0 %v195
    %617 = vmatpush.msra.mxu0 %v194
    %618 = vmatpush.msra.mxu0 %v193
    %619 = vmatpush.msra.mxu0 %v192
    %620 = vmatpush.msra.mxu0 %v191
    %621 = vmatpush.msra.mxu0 %v190
    %622 = vmatpush.msra.mxu0 %v189
    %623 = vmatpush.msra.mxu0 %v188
    %624 = vmatpush.msra.mxu0 %v187
    %625 = vmatpush.msra.mxu0 %v186
    %626 = vmatpush.msra.mxu0 %v185
    %627 = vmatpush.msra.mxu0 %v184
    %628 = vmatpush.msra.mxu0 %v183
    %629 = vmatpush.msra.mxu0 %v182
    %630 = vmatpush.msra.mxu0 %v181
    %631 = vmatpush.msra.mxu0 %v180
    %632 = vmatmul.f32.gmra.mxu0 %v64
    %v633 = vpop.f32.mrf.mxu0
    %v634 = vadd.f32 %v614, %v633
    %635 = vdwg.mxu0
    %636 = vmatpush.msra.mxu0 %v211
    %637 = vmatpush.msra.mxu0 %v210
    %638 = vmatpush.msra.mxu0 %v209
    %639 = vmatpush.msra.mxu0 %v208
    %640 = vmatpush.msra.mxu0 %v207
    %641 = vmatpush.msra.mxu0 %v206
    %642 = vmatpush.msra.mxu0 %v205
    %643 = vmatpush.msra.mxu0 %v204
    %644 = vmatpush.msra.mxu0 %v203
    %645 = vmatpush.msra.mxu0 %v202
    %646 = vmatpush.msra.mxu0 %v201
    %647 = vmatpush.msra.mxu0 %v200
    %648 = vmatpush.msra.mxu0 %v199
    %649 = vmatpush.msra.mxu0 %v198
    %650 = vmatpush.msra.mxu0 %v197
    %651 = vmatpush.msra.mxu0 %v196
    %652 = vmatmul.f32.gmra.mxu0 %v65
    %v653 = vpop.f32.mrf.mxu0
    %v654 = vadd.f32 %v634, %v653
    %655 = vdwg.mxu0
    %656 = vmatpush.msra.mxu0 %v227
    %657 = vmatpush.msra.mxu0 %v226
    %658 = vmatpush.msra.mxu0 %v225
    %659 = vmatpush.msra.mxu0 %v224
    %660 = vmatpush.msra.mxu0 %v223
    %661 = vmatpush.msra.mxu0 %v222
    %662 = vmatpush.msra.mxu0 %v221
    %663 = vmatpush.msra.mxu0 %v220
    %664 = vmatpush.msra.mxu0 %v219
    %665 = vmatpush.msra.mxu0 %v218
    %666 = vmatpush.msra.mxu0 %v217
    %667 = vmatpush.msra.mxu0 %v216
    %668 = vmatpush.msra.mxu0 %v215
    %669 = vmatpush.msra.mxu0 %v214
    %670 = vmatpush.msra.mxu0 %v213
    %671 = vmatpush.msra.mxu0 %v212
    %672 = vmatmul.f32.gmra.mxu0 %v66
    %v673 = vpop.f32.mrf.mxu0
    %v674 = vadd.f32 %v654, %v673
    %675 = vdwg.mxu0
    %676 = vmatpush.msra.mxu0 %v243
    %677 = vmatpush.msra.mxu0 %v242
    %678 = vmatpush.msra.mxu0 %v241
    %679 = vmatpush.msra.mxu0 %v240
    %680 = vmatpush.msra.mxu0 %v239
    %681 = vmatpush.msra.mxu0 %v238
    %682 = vmatpush.msra.mxu0 %v237
    %683 = vmatpush.msra.mxu0 %v236
    %684 = vmatpush.msra.mxu0 %v235
    %685 = vmatpush.msra.mxu0 %v234
    %686 = vmatpush.msra.mxu0 %v233
    %687 = vmatpush.msra.mxu0 %v232
    %688 = vmatpush.msra.mxu0 %v231
    %689 = vmatpush.msra.mxu0 %v230
    %690 = vmatpush.msra.mxu0 %v229
    %691 = vmatpush.msra.mxu0 %v228
    %692 = vmatmul.f32.gmra.mxu0 %v67
    %v693 = vpop.f32.mrf.mxu0
    %v694 = vadd.f32 %v674, %v693
    %695 = vdwg.mxu0
    %696 = vmatpush.msra.mxu0 %v259
    %697 = vmatpush.msra.mxu0 %v258
    %698 = vmatpush.msra.mxu0 %v257
    %699 = vmatpush.msra.mxu0 %v256
    %700 = vmatpush.msra.mxu0 %v255
    %701 = vmatpush.msra.mxu0 %v254
    %702 = vmatpush.msra.mxu0 %v253
    %703 = vmatpush.msra.mxu0 %v252
    %704 = vmatpush.msra.mxu0 %v251
    %705 = vmatpush.msra.mxu0 %v250
    %706 = vmatpush.msra.mxu0 %v249
    %707 = vmatpush.msra.mxu0 %v248
    %708 = vmatpush.msra.mxu0 %v247
    %709 = vmatpush.msra.mxu0 %v246
    %710 = vmatpush.msra.mxu0 %v245
    %711 = vmatpush.msra.mxu0 %v244
    %712 = vmatmul.f32.gmra.mxu0 %v68
    %v713 = vpop.f32.mrf.mxu0
    %v714 = vadd.f32 %v694, %v713
    %715 = vdwg.mxu0
    %716 = vmatpush.msra.mxu0 %v275
    %717 = vmatpush.msra.mxu0 %v274
    %718 = vmatpush.msra.mxu0 %v273
    %719 = vmatpush.msra.mxu0 %v272
    %720 = vmatpush.msra.mxu0 %v271
    %721 = vmatpush.msra.mxu0 %v270
    %722 = vmatpush.msra.mxu0 %v269
    %723 = vmatpush.msra.mxu0 %v268
    %724 = vmatpush.msra.mxu0 %v267
    %725 = vmatpush.msra.mxu0 %v266
    %726 = vmatpush.msra.mxu0 %v265
    %727 = vmatpush.msra.mxu0 %v264
    %728 = vmatpush.msra.mxu0 %v263
    %729 = vmatpush.msra.mxu0 %v262
    %730 = vmatpush.msra.mxu0 %v261
    %731 = vmatpush.msra.mxu0 %v260
    %732 = vmatmul.f32.gmra.mxu0 %v69
    %v733 = vpop.f32.mrf.mxu0
    %v734 = vadd.f32 %v714, %v733
    %735 = vdwg.mxu0
    %736 = vmatpush.msra.mxu0 %v291
    %737 = vmatpush.msra.mxu0 %v290
    %738 = vmatpush.msra.mxu0 %v289
    %739 = vmatpush.msra.mxu0 %v288
    %740 = vmatpush.msra.mxu0 %v287
    %741 = vmatpush.msra.mxu0 %v286
    %742 = vmatpush.msra.mxu0 %v285
    %743 = vmatpush.msra.mxu0 %v284
    %744 = vmatpush.msra.mxu0 %v283
    %745 = vmatpush.msra.mxu0 %v282
    %746 = vmatpush.msra.mxu0 %v281
    %747 = vmatpush.msra.mxu0 %v280
    %748 = vmatpush.msra.mxu0 %v279
    %749 = vmatpush.msra.mxu0 %v278
    %750 = vmatpush.msra.mxu0 %v277
    %751 = vmatpush.msra.mxu0 %v276
    %752 = vmatmul.f32.gmra.mxu0 %v70
    %v753 = vpop.f32.mrf.mxu0
    %v754 = vadd.f32 %v734, %v753
    %755 = vdwg.mxu0
    %756 = vmatpush.msra.mxu0 %v307
    %757 = vmatpush.msra.mxu0 %v306
    %758 = vmatpush.msra.mxu0 %v305
    %759 = vmatpush.msra.mxu0 %v304
    %760 = vmatpush.msra.mxu0 %v303
    %761 = vmatpush.msra.mxu0 %v302
    %762 = vmatpush.msra.mxu0 %v301
    %763 = vmatpush.msra.mxu0 %v300
    %764 = vmatpush.msra.mxu0 %v299
    %765 = vmatpush.msra.mxu0 %v298
    %766 = vmatpush.msra.mxu0 %v297
    %767 = vmatpush.msra.mxu0 %v296
    %768 = vmatpush.msra.mxu0 %v295
    %769 = vmatpush.msra.mxu0 %v294
    %770 = vmatpush.msra.mxu0 %v293
    %771 = vmatpush.msra.mxu0 %v292
    %772 = vmatmul.f32.gmra.mxu0 %v71
    %v773 = vpop.f32.mrf.mxu0
    %v774 = vadd.f32 %v754, %v773
    %775 = vdwg.mxu0
    %776 = vmatpush.msra.mxu0 %v323
    %777 = vmatpush.msra.mxu0 %v322
    %778 = vmatpush.msra.mxu0 %v321
    %779 = vmatpush.msra.mxu0 %v320
    %780 = vmatpush.msra.mxu0 %v319
    %781 = vmatpush.msra.mxu0 %v318
    %782 = vmatpush.msra.mxu0 %v317
    %783 = vmatpush.msra.mxu0 %v316
    %784 = vmatpush.msra.mxu0 %v315
    %785 = vmatpush.msra.mxu0 %v314
    %786 = vmatpush.msra.mxu0 %v313
    %787 = vmatpush.msra.mxu0 %v312
    %788 = vmatpush.msra.mxu0 %v311
    %789 = vmatpush.msra.mxu0 %v310
    %790 = vmatpush.msra.mxu0 %v309
    %791 = vmatpush.msra.mxu0 %v308
    %792 = vmatmul.f32.gmra.mxu0 %v72
    %v793 = vpop.f32.mrf.mxu0
    %v794 = vadd.f32 %v774, %v793
    %795 = vdwg.mxu0
    %796 = vmatpush.msra.mxu0 %v339
    %797 = vmatpush.msra.mxu0 %v338
    %798 = vmatpush.msra.mxu0 %v337
    %799 = vmatpush.msra.mxu0 %v336
    %800 = vmatpush.msra.mxu0 %v335
    %801 = vmatpush.msra.mxu0 %v334
    %802 = vmatpush.msra.mxu0 %v333
    %803 = vmatpush.msra.mxu0 %v332
    %804 = vmatpush.msra.mxu0 %v331
    %805 = vmatpush.msra.mxu0 %v330
    %806 = vmatpush.msra.mxu0 %v329
    %807 = vmatpush.msra.mxu0 %v328
    %808 = vmatpush.msra.mxu0 %v327
    %809 = vmatpush.msra.mxu0 %v326
    %810 = vmatpush.msra.mxu0 %v325
    %811 = vmatpush.msra.mxu0 %v324
    %812 = vmatmul.f32.gmra.mxu0 %v73
    %v813 = vpop.f32.mrf.mxu0
    %v814 = vadd.f32 %v794, %v813
    %815 = vdwg.mxu0
    %816 = vmatpush.msra.mxu0 %v355
    %817 = vmatpush.msra.mxu0 %v354
    %818 = vmatpush.msra.mxu0 %v353
    %819 = vmatpush.msra.mxu0 %v352
    %820 = vmatpush.msra.mxu0 %v351
    %821 = vmatpush.msra.mxu0 %v350
    %822 = vmatpush.msra.mxu0 %v349
    %823 = vmatpush.msra.mxu0 %v348
    %824 = vmatpush.msra.mxu0 %v347
    %825 = vmatpush.msra.mxu0 %v346
    %826 = vmatpush.msra.mxu0 %v345
    %827 = vmatpush.msra.mxu0 %v344
    %828 = vmatpush.msra.mxu0 %v343
    %829 = vmatpush.msra.mxu0 %v342
    %830 = vmatpush.msra.mxu0 %v341
    %831 = vmatpush.msra.mxu0 %v340
    %832 = vmatmul.f32.gmra.mxu0 %v74
    %v833 = vpop.f32.mrf.mxu0
    %v834 = vadd.f32 %v814, %v833
    %835 = vdwg.mxu0
    %836 = vmatpush.msra.mxu0 %v371
    %837 = vmatpush.msra.mxu0 %v370
    %838 = vmatpush.msra.mxu0 %v369
    %839 = vmatpush.msra.mxu0 %v368
    %840 = vmatpush.msra.mxu0 %v367
    %841 = vmatpush.msra.mxu0 %v366
    %842 = vmatpush.msra.mxu0 %v365
    %843 = vmatpush.msra.mxu0 %v364
    %844 = vmatpush.msra.mxu0 %v363
    %845 = vmatpush.msra.mxu0 %v362
    %846 = vmatpush.msra.mxu0 %v361
    %847 = vmatpush.msra.mxu0 %v360
    %848 = vmatpush.msra.mxu0 %v359
    %849 = vmatpush.msra.mxu0 %v358
    %850 = vmatpush.msra.mxu0 %v357
    %851 = vmatpush.msra.mxu0 %v356
    %852 = vmatmul.f32.gmra.mxu0 %v75
    %v853 = vpop.f32.mrf.mxu0
    %v854 = vadd.f32 %v834, %v853
    %855 = vdwg.mxu0
    %856 = vmatpush.msra.mxu0 %v387
    %857 = vmatpush.msra.mxu0 %v386
    %858 = vmatpush.msra.mxu0 %v385
    %859 = vmatpush.msra.mxu0 %v384
    %860 = vmatpush.msra.mxu0 %v383
    %861 = vmatpush.msra.mxu0 %v382
    %862 = vmatpush.msra.mxu0 %v381
    %863 = vmatpush.msra.mxu0 %v380
    %864 = vmatpush.msra.mxu0 %v379
    %865 = vmatpush.msra.mxu0 %v378
    %866 = vmatpush.msra.mxu0 %v377
    %867 = vmatpush.msra.mxu0 %v376
    %868 = vmatpush.msra.mxu0 %v375
    %869 = vmatpush.msra.mxu0 %v374
    %870 = vmatpush.msra.mxu0 %v373
    %871 = vmatpush.msra.mxu0 %v372
    %872 = vmatmul.f32.gmra.mxu0 %v76
    %v873 = vpop.f32.mrf.mxu0
    %v874 = vadd.f32 %v854, %v873
    %875 = vdwg.mxu0
    %876 = vmatpush.msra.mxu0 %v403
    %877 = vmatpush.msra.mxu0 %v402
    %878 = vmatpush.msra.mxu0 %v401
    %879 = vmatpush.msra.mxu0 %v400
    %880 = vmatpush.msra.mxu0 %v399
    %881 = vmatpush.msra.mxu0 %v398
    %882 = vmatpush.msra.mxu0 %v397
    %883 = vmatpush.msra.mxu0 %v396
    %884 = vmatpush.msra.mxu0 %v395
    %885 = vmatpush.msra.mxu0 %v394
    %886 = vmatpush.msra.mxu0 %v393
    %887 = vmatpush.msra.mxu0 %v392
    %888 = vmatpush.msra.mxu0 %v391
    %889 = vmatpush.msra.mxu0 %v390
    %890 = vmatpush.msra.mxu0 %v389
    %891 = vmatpush.msra.mxu0 %v388
    %892 = vmatmul.f32.gmra.mxu0 %v77
    %v893 = vpop.f32.mrf.mxu0
    %v894 = vadd.f32 %v874, %v893
    %895 = vdwg.mxu0
    %896 = vmatpush.msra.mxu0 %v419
    %897 = vmatpush.msra.mxu0 %v418
    %898 = vmatpush.msra.mxu0 %v417
    %899 = vmatpush.msra.mxu0 %v416
    %900 = vmatpush.msra.mxu0 %v415
    %901 = vmatpush.msra.mxu0 %v414
    %902 = vmatpush.msra.mxu0 %v413
    %903 = vmatpush.msra.mxu0 %v412
    %904 = vmatpush.msra.mxu0 %v411
    %905 = vmatpush.msra.mxu0 %v410
    %906 = vmatpush.msra.mxu0 %v409
    %907 = vmatpush.msra.mxu0 %v408
    %908 = vmatpush.msra.mxu0 %v407
    %909 = vmatpush.msra.mxu0 %v406
    %910 = vmatpush.msra.mxu0 %v405
    %911 = vmatpush.msra.mxu0 %v404
    %912 = vmatmul.f32.gmra.mxu0 %v78
    %v913 = vpop.f32.mrf.mxu0
    %v914 = vadd.f32 %v894, %v913
    %915 = vdwg.mxu0
    %916 = vmatpush.msra.mxu0 %v435
    %917 = vmatpush.msra.mxu0 %v434
    %918 = vmatpush.msra.mxu0 %v433
    %919 = vmatpush.msra.mxu0 %v432
    %920 = vmatpush.msra.mxu0 %v431
    %921 = vmatpush.msra.mxu0 %v430
    %922 = vmatpush.msra.mxu0 %v429
    %923 = vmatpush.msra.mxu0 %v428
    %924 = vmatpush.msra.mxu0 %v427
    %925 = vmatpush.msra.mxu0 %v426
    %926 = vmatpush.msra.mxu0 %v425
    %927 = vmatpush.msra.mxu0 %v424
    %928 = vmatpush.msra.mxu0 %v423
    %929 = vmatpush.msra.mxu0 %v422
    %930 = vmatpush.msra.mxu0 %v421
    %931 = vmatpush.msra.mxu0 %v420
    %932 = vmatmul.f32.gmra.mxu0 %v79
    %v933 = vpop.f32.mrf.mxu0
    %v934 = vadd.f32 %v914, %v933
    %935 = vdwg.mxu0
    %936 = vmatpush.msra.mxu0 %v451
    %937 = vmatpush.msra.mxu0 %v450
    %938 = vmatpush.msra.mxu0 %v449
    %939 = vmatpush.msra.mxu0 %v448
    %940 = vmatpush.msra.mxu0 %v447
    %941 = vmatpush.msra.mxu0 %v446
    %942 = vmatpush.msra.mxu0 %v445
    %943 = vmatpush.msra.mxu0 %v444
    %944 = vmatpush.msra.mxu0 %v443
    %945 = vmatpush.msra.mxu0 %v442
    %946 = vmatpush.msra.mxu0 %v441
    %947 = vmatpush.msra.mxu0 %v440
    %948 = vmatpush.msra.mxu0 %v439
    %949 = vmatpush.msra.mxu0 %v438
    %950 = vmatpush.msra.mxu0 %v437
    %951 = vmatpush.msra.mxu0 %v436
    %952 = vmatmul.f32.gmra.mxu0 %v80
    %v953 = vpop.f32.mrf.mxu0
    %v954 = vadd.f32 %v934, %v953
    %955 = vdwg.mxu0
    %956 = vmatpush.msra.mxu0 %v467
    %957 = vmatpush.msra.mxu0 %v466
    %958 = vmatpush.msra.mxu0 %v465
    %959 = vmatpush.msra.mxu0 %v464
    %960 = vmatpush.msra.mxu0 %v463
    %961 = vmatpush.msra.mxu0 %v462
    %962 = vmatpush.msra.mxu0 %v461
    %963 = vmatpush.msra.mxu0 %v460
    %964 = vmatpush.msra.mxu0 %v459
    %965 = vmatpush.msra.mxu0 %v458
    %966 = vmatpush.msra.mxu0 %v457
    %967 = vmatpush.msra.mxu0 %v456
    %968 = vmatpush.msra.mxu0 %v455
    %969 = vmatpush.msra.mxu0 %v454
    %970 = vmatpush.msra.mxu0 %v453
    %971 = vmatpush.msra.mxu0 %v452
    %972 = vmatmul.f32.gmra.mxu0 %v81
    %v973 = vpop.f32.mrf.mxu0
    %v974 = vadd.f32 %v954, %v973
    %975 = vdwg.mxu0
    %976 = vmatpush.msra.mxu0 %v483
    %977 = vmatpush.msra.mxu0 %v482
    %978 = vmatpush.msra.mxu0 %v481
    %979 = vmatpush.msra.mxu0 %v480
    %980 = vmatpush.msra.mxu0 %v479
    %981 = vmatpush.msra.mxu0 %v478
    %982 = vmatpush.msra.mxu0 %v477
    %983 = vmatpush.msra.mxu0 %v476
    %984 = vmatpush.msra.mxu0 %v475
    %985 = vmatpush.msra.mxu0 %v474
    %986 = vmatpush.msra.mxu0 %v473
    %987 = vmatpush.msra.mxu0 %v472
    %988 = vmatpush.msra.mxu0 %v471
    %989 = vmatpush.msra.mxu0 %v470
    %990 = vmatpush.msra.mxu0 %v469
    %991 = vmatpush.msra.mxu0 %v468
    %992 = vmatmul.f32.gmra.mxu0 %v82
    %v993 = vpop.f32.mrf.mxu0
    %v994 = vadd.f32 %v974, %v993
    %995 = vdwg.mxu0
    %996 = vmatpush.msra.mxu0 0.0
    %997 = vmatpush.msra.mxu0 0.0
    %998 = vmatpush.msra.mxu0 0.0
    %999 = vmatpush.msra.mxu0 0.0
    %1000 = vmatpush.msra.mxu0 0.0
    %1001 = vmatpush.msra.mxu0 0.0
    %1002 = vmatpush.msra.mxu0 0.0
    %1003 = vmatpush.msra.mxu0 0.0
    %1004 = vmatpush.msra.mxu0 0.0
    %1005 = vmatpush.msra.mxu0 0.0
    %1006 = vmatpush.msra.mxu0 0.0
    %1007 = vmatpush.msra.mxu0 0.0
    %1008 = vmatpush.msra.mxu0 %v487
    %1009 = vmatpush.msra.mxu0 %v486
    %1010 = vmatpush.msra.mxu0 %v485
    %1011 = vmatpush.msra.mxu0 %v484
    %1012 = vmatmul.f32.gmra.mxu0 %v494
    %v1013 = vpop.f32.mrf.mxu0
    %v1014 = vadd.f32 %v994, %v1013
    %1015 = vdwg.mxu0
    %v1016 = vsub.f32 0.0, %v1014
    %v1017 = vmul.f32 %v1016, 1.442695
    %v1018 = vpow.pop %v1017
    %v1019 = vadd.f32 %v1018, 1.0
    %v1020 = vrcp.pop %v1019
    %1021 = vst [vmem:[#allocation8] sm:$0xff] %v1020
    // Predicated region
    $region26: #{tpu_custom_call.1} parent=1 // pred_check
      _
    $region27: #{tpu_custom_call.1} parent=1 // pred_check_branch
      %1023 = sbr.rel (0) target = $region29
    $region28: #{tpu_custom_call.1} parent=1 // pred_region
      %1025 = vsyncadd [#allocation4], 0
      %s1027 = sshll.u32 [#allocation8], 4
      %s1028 = int_to_ptr.vmem [resolvable:$true] %s1027
      %s1029 = sshll.u32 %s3, 4
      %s1030 = int_to_ptr.hbm [resolvable:$true] %s1029
      %1032 = dma.vmem_to_hbm [thread:$0]  %s1028, 128, %s1030, [#allocation4]
    $region29: #{tpu_custom_call.1} parent=1 // pred_fallthru
      _
    // Predicated region
    $region30: #{tpu_custom_call.1} parent=1 // pred_check
      _
    $region31: #{tpu_custom_call.1} parent=1 // pred_check_branch
      %1034 = sbr.rel (0) target = $region33
    $region32: #{tpu_custom_call.1} parent=1 // pred_region
      %1036 = dma.done [#allocation4], 128
    $region33: #{tpu_custom_call.1} parent=1 // pred_fallthru
      _
    %1037 = vsyncpa [#allocation3], 1
    %1038 = vsyncpa [#allocation6], 1
    %1039 = vsyncpa [#allocation4], 1

</llo_original>
